<compile_context>
chip_gen: v5e
topology: v5e:2x2
jax: 0.10.0
libtpu: 0.0.40
codegen_flags: <defaults>
</compile_context>

<pallas_src>
import functools

import jax
import jax.numpy as jnp
from jax.experimental import pallas as pl
from jax.experimental.pallas import tpu as pltpu


# --------------------------------------------------------------------------- #
# Roll-direction probe: returns sign s so that
#   pltpu.roll(x, shift=(s*off) % L, axis=-1)[p] == x[(p + off) % L]
# --------------------------------------------------------------------------- #
@functools.lru_cache(maxsize=None)
def _roll_offset_sign():
    def probe(x_ref, o_ref):
        o_ref[...] = pltpu.roll(x_ref[...], shift=1, axis=1)

    x = jax.lax.broadcasted_iota(jnp.float32, (8, 128), 1)
    y = pl.pallas_call(
        probe, out_shape=jax.ShapeDtypeStruct((8, 128), jnp.float32))(x)
    first = float(y[0, 0])
    if first == 127.0:   # jnp.roll convention: out[i] = in[(i - shift) % n]
        return -1
    if first == 1.0:     # opposite convention: out[i] = in[(i + shift) % n]
        return 1
    raise RuntimeError(f"unexpected pltpu.roll semantics (probe value {first})")


# --------------------------------------------------------------------------- #
# Kernel
# --------------------------------------------------------------------------- #
def fd_loss_kernel(s_ref, t_ref, wa_ref, ba_ref, w1_ref, b1_ref, w2_ref, b2_ref,
                   out_ref, *, H, W, B, roll_sign, use_im2col):
    """One grid step processes B images.  All activations live as (C, L=H*W) f32.

    s_ref:  (B, Cs, L)   student block (f32 in HBM; cast to bf16 for the MXU)
    t_ref:  (B, Ct, L)   teacher block
    wa_ref: (Ct, Cs)     bf16 1x1 align weight, (Cout, Cin)
    ba_ref: (Ct, 1)      f32
    w1/w2:  (Ct, 9*Ct)   bf16 3x3 weights, columns ordered [(ky*3+kx)*Cin + cin]
    b1/b2:  (Ct, 1)      f32
    out:    (B, 1, L)    per-pixel channel-reduced sum of (nf - tn)^2
    """
    L = H * W

    # ---- tap validity masks, computed once per step from iota (no mask inputs)
    pos = jax.lax.broadcasted_iota(jnp.int32, (1, L), 1)
    row = pos // W
    col = pos % W

    def tap_mask(dy, dx):
        cond = None
        if dy == -1:
            cond = row >= 1
        elif dy == 1:
            cond = row <= H - 2
        if dx == -1:
            c = col >= 1
            cond = c if cond is None else jnp.logical_and(cond, c)
        elif dx == 1:
            c = col <= W - 2
            cond = c if cond is None else jnp.logical_and(cond, c)
        return None if cond is None else jnp.where(cond, 1.0, 0.0)

    masks = [tap_mask(k // 3 - 1, k % 3 - 1) for k in range(9)]

    # ---- grid-invariant operands, read once (shared by all B images) --------
    wa = wa_ref[...]          # bf16
    w1 = w1_ref[...]          # bf16
    w2 = w2_ref[...]          # bf16
    ba = ba_ref[...]          # f32
    b1 = b1_ref[...]
    b2 = b2_ref[...]

    def conv3x3(inp, w, bias):
        """3x3 'same' conv: inp (Cin, L) f32, w (Cout, 9*Cin) bf16, bias (Cout,1) f32."""
        cin = inp.shape[0]
        pieces = []
        acc = None
        for k in range(9):
            dy, dx = k // 3 - 1, k % 3 - 1
            off = dy * W + dx
            # window[p] = inp[p + off] for valid taps; circular-wrap positions are
            # exactly the ones the row/col masks zero out.
            if off == 0:
                win = inp
            else:
                win = pltpu.roll(inp, shift=(roll_sign * off) % L, axis=1)
            if masks[k] is not None:
                win = win * masks[k]
            if use_im2col:
                pieces.append(win)                       # keep f32, concat is tile-aligned
            else:
                part = jnp.dot(w[:, k * cin:(k + 1) * cin],
                               win.astype(jnp.bfloat16),
                               preferred_element_type=jnp.float32)
                acc = part if acc is None else acc + part
        if use_im2col:
            patches = jnp.concatenate(pieces, axis=0).astype(jnp.bfloat16)  # (9*Cin, L)
            acc = jnp.dot(w, patches, preferred_element_type=jnp.float32)
        return acc + bias

    eps2 = jnp.float32(1e-24)   # eps^2 of F.normalize's 1e-12 clamp

    for b in range(B):          # static unroll; amortizes per-step overhead
        # --- align: 1x1 conv == channel matmul ------------------------------
        x = s_ref[b].astype(jnp.bfloat16)                                # (Cs, L)
        y = jnp.dot(wa, x, preferred_element_type=jnp.float32) + ba      # (Ct, L)

        # --- generation: conv3x3 -> ReLU -> conv3x3 -------------------------
        h1 = jnp.maximum(conv3x3(y, w1, b1), 0.0)
        g = conv3x3(h1, w2, b2)

        # --- F.normalize(dim=channel) + squared diff -------------------------
        t = t_ref[b].astype(jnp.float32)                                 # (Ct, L)
        # 1/max(||v||, eps) == rsqrt(max(||v||^2, eps^2))
        inv_g = jax.lax.rsqrt(
            jnp.maximum(jnp.sum(g * g, axis=0, keepdims=True), eps2))
        inv_t = jax.lax.rsqrt(
            jnp.maximum(jnp.sum(t * t, axis=0, keepdims=True), eps2))
        d = g * inv_g - t * inv_t
        # channel-only (sublane) reduce; cross-lane/global reduce in the wrapper
        out_ref[b] = jnp.sum(d * d, axis=0, keepdims=True)               # (1, L)


# --------------------------------------------------------------------------- #
# Wrapper
# --------------------------------------------------------------------------- #
def _images_per_step(N, Cs, Ct, L):
    """Batch images per grid step for small per-image work; keep >= 2 grid steps."""
    if Ct > 64 and L > 1024:
        return 1
    if N < 2:
        return 1
    per_image_bytes = (Cs + 2 * Ct + 1) * L * 4
    b = min(N // 2, max(1, (2 << 20) // per_image_bytes))
    b = max(b, 1)
    while N % b:
        b -= 1
    return b


def fd_loss(preds_S, preds_T, params_kernel, alpha_fd, *, force_matmul_path=None):
    """preds_S: (N, Cs, H, W), preds_T: (N, Ct, H, W) — NCHW like PyTorch.

    params_kernel = (wa (Ct,Cs), ba (Ct,1), w1 (Ct,9Ct), b1 (Ct,1), w2 (Ct,9Ct), b2 (Ct,1)).
    (When student_dims == teacher_dims the PyTorch module skips `align`; pass an
    identity wa and zero ba in that case.)
    """
    N, Cs, H, W = preds_S.shape
    Ct = preds_T.shape[1]
    L = H * W
    wa, ba, w1f, b1, w2f, b2 = params_kernel

    # bf16 operands for the MXU (accumulation stays f32 in-kernel); biases stay f32.
    wa = wa.astype(jnp.bfloat16)
    w1f = w1f.astype(jnp.bfloat16)
    w2f = w2f.astype(jnp.bfloat16)

    # free reshapes (contiguous (H,W) collapse) — no NCHW transpose, no HBM round trip
    s = preds_S.reshape(N, Cs, L)
    t = preds_T.reshape(N, Ct, L)

    if force_matmul_path is None:
        use_im2col = Ct < 128      # big-K im2col only pays off for small channel counts
    else:
        use_im2col = force_matmul_path == "im2col"

    B = _images_per_step(N, Cs, Ct, L)
    roll_sign = _roll_offset_sign()

    kernel = functools.partial(fd_loss_kernel, H=H, W=W, B=B,
                               roll_sign=roll_sign, use_im2col=use_im2col)

    # VMEM budget estimate: double-buffered s/t/out blocks + weights + live f32 temps.
    in_bytes = B * (Cs + Ct) * L * 4
    out_bytes = B * L * 4
    w_bytes = (Ct * Cs + 2 * 9 * Ct * Ct) * 2 + 3 * Ct * 4
    tmp_bytes = 8 * Ct * L * 4 + (9 * Ct * L * 2 if use_im2col else 0)
    est = 2 * (in_bytes + out_bytes) + 2 * w_bytes + tmp_bytes
    vmem_limit = int(min(max(32 << 20, (3 * est) // 2), 112 << 20))

    def build(single_buffer_consts):
        def cspec(shape):
            idx = lambda n: (0,) * len(shape)
            if single_buffer_consts and hasattr(pl, "Buffered"):
                try:
                    # grid-invariant operands: fetched once, no need for 2 buffers
                    return pl.BlockSpec(shape, idx, pipeline_mode=pl.Buffered(1))
                except TypeError:
                    pass
            return pl.BlockSpec(shape, idx)

        in_specs = [
            pl.BlockSpec((B, Cs, L), lambda n: (n, 0, 0)),
            pl.BlockSpec((B, Ct, L), lambda n: (n, 0, 0)),
            cspec((Ct, Cs)), cspec((Ct, 1)),
            cspec((Ct, 9 * Ct)), cspec((Ct, 1)),
            cspec((Ct, 9 * Ct)), cspec((Ct, 1)),
        ]
        return pl.pallas_call(
            kernel,
            out_shape=jax.ShapeDtypeStruct((N, 1, L), jnp.float32),
            grid_spec=pltpu.PrefetchScalarGridSpec(
                num_scalar_prefetch=0,
                grid=(N // B,),
                in_specs=in_specs,
                out_specs=pl.BlockSpec((B, 1, L), lambda n: (n, 0, 0)),
            ),
            compiler_params=pltpu.CompilerParams(
                dimension_semantics=("parallel",),   # independent per-block partials
                vmem_limit_bytes=vmem_limit),
        )

    args = (s, t, wa, ba, w1f, b1, w2f, b2)
    try:
        per_pixel = build(True)(*args)
    except Exception:
        # graceful fallback for jax versions without pipeline_mode=Buffered support
        per_pixel = build(False)(*args)

    return jnp.sum(per_pixel) * jnp.float32(alpha_fd / N)


# --------------------------------------------------------------------------- #
# Pure-JAX NCHW reference (mirrors the PyTorch module, full f32)
# --------------------------------------------------------------------------- #
def fd_loss_reference(preds_S, preds_T, params_oihw, alpha_fd):
    wa, ba, w1, b1, w2, b2 = params_oihw
    dn = ('NCHW', 'OIHW', 'NCHW')
    x = jax.lax.conv_general_dilated(preds_S, wa, (1, 1), 'VALID',
                                     dimension_numbers=dn) + ba[None, :, None, None]
    h = jax.lax.conv_general_dilated(x, w1, (1, 1), ((1, 1), (1, 1)),
                                     dimension_numbers=dn) + b1[None, :, None, None]
    h = jnp.maximum(h, 0.0)
    g = jax.lax.conv_general_dilated(h, w2, (1, 1), ((1, 1), (1, 1)),
                                     dimension_numbers=dn) + b2[None, :, None, None]

    def l2norm_c(v):
        n = jnp.sqrt(jnp.sum(v * v, axis=1, keepdims=True))
        return v / jnp.maximum(n, 1e-12)

    d = l2norm_c(g) - l2norm_c(preds_T)
    return jnp.sum(d * d) / preds_T.shape[0] * alpha_fd


if __name__ == "__main__":
    # small deterministic setup (student_dims != teacher_dims -> align conv applies)
    N, Cs, Ct, H, W = 4, 4, 8, 16, 16
    alpha_fd = 2.0

    key = jax.random.PRNGKey(0)
    ks = jax.random.split(key, 8)
    preds_S = jax.random.normal(ks[0], (N, Cs, H, W), jnp.float32)
    preds_T = jax.random.normal(ks[1], (N, Ct, H, W), jnp.float32)

    # deterministic "parameters" in PyTorch OIHW layout
    wa_oihw = jax.random.normal(ks[2], (Ct, Cs, 1, 1), jnp.float32) * 0.3
    ba = jax.random.normal(ks[3], (Ct,), jnp.float32) * 0.1
    w1_oihw = jax.random.normal(ks[4], (Ct, Ct, 3, 3), jnp.float32) * 0.15
    b1 = jax.random.normal(ks[5], (Ct,), jnp.float32) * 0.1
    w2_oihw = jax.random.normal(ks[6], (Ct, Ct, 3, 3), jnp.float32) * 0.15
    b2 = jax.random.normal(ks[7], (Ct,), jnp.float32) * 0.1

    # kernel-layout parameters: (Cout, Cin) for the 1x1, flattened (Cout, 9*Cin)
    # with column ordering [(ky*3+kx)*Cin + cin] for the 3x3s.
    wa_k = wa_oihw[:, :, 0, 0]
    w1_k = jnp.transpose(w1_oihw, (0, 2, 3, 1)).reshape(Ct, 9 * Ct)
    w2_k = jnp.transpose(w2_oihw, (0, 2, 3, 1)).reshape(Ct, 9 * Ct)
    params_kernel = (wa_k, ba.reshape(Ct, 1), w1_k, b1.reshape(Ct, 1),
                     w2_k, b2.reshape(Ct, 1))
    params_oihw = (wa_oihw, ba, w1_oihw, b1, w2_oihw, b2)

    ref = jax.block_until_ready(
        fd_loss_reference(preds_S, preds_T, params_oihw, alpha_fd))

    # default path for small Ct (im2col, single big-K matmul)
    loss_im2col = jax.block_until_ready(
        fd_loss(preds_S, preds_T, params_kernel, alpha_fd))
    # large-Ct path (9 accumulated matmuls), force-exercised here for coverage
    loss_accum = jax.block_until_ready(
        fd_loss(preds_S, preds_T, params_kernel, alpha_fd,
                force_matmul_path="accumulate"))

    tol = 2e-2   # bf16 MXU operands with f32 accumulation vs. full-f32 reference
    for name, val in (("im2col", loss_im2col), ("accumulate", loss_accum)):
        assert jnp.isfinite(val), f"non-finite loss ({name})"
        assert abs(float(val) - float(ref)) <= tol * max(1.0, abs(float(ref))), \
            f"mismatch ({name}): pallas={float(val)} ref={float(ref)}"
    print("KERNEL_OK")
</pallas_src>

<mosaic_0001>
module attributes {stable_mosaic.version = 11 : i64} {
  func.func @probe(%arg0: memref<8x128xf32, #tpu.memory_space<vmem>>, %arg1: memref<8x128xf32, #tpu.memory_space<vmem>>) attributes {dimension_semantics = [], scalar_prefetch = 0 : i64, scratch_operands = 0 : i64, tpu.core_type = #tpu.core_type<tc>} {
    %c0 = arith.constant 0 : index
    %c0_0 = arith.constant 0 : index
    %0 = vector.load %arg0[%c0, %c0_0] : memref<8x128xf32, #tpu.memory_space<vmem>>, vector<8x128xf32>
    %c1_i32 = arith.constant 1 : i32
    %1 = tpu.dynamic_rotate %0 by %c1_i32 dim 1 : vector<8x128xf32>, i32 -> vector<8x128xf32>
    %c0_1 = arith.constant 0 : index
    %c0_2 = arith.constant 0 : index
    %2 = vector.load %arg1[%c0_1, %c0_2] : memref<8x128xf32, #tpu.memory_space<vmem>>, vector<8x128xf32>
    tpu.vector_store %arg1[%c0_1, %c0_2], %1 {strides = array<i32>} : memref<8x128xf32, #tpu.memory_space<vmem>>, vector<8x128xf32>,
    return
  }
}

</mosaic_0001>

<llo_original>
// kernel: tpu_custom_call.1
$region0: #{tpu_custom_call.1}
  #allocation0 [shape = 'u32[]', space=smem, size = 0x4, offset = 0x4, fixed_abs, tag = 'smem constant byte address 0x4 - core index']
  #allocation1 [shape = 'u32[72,128]{1,0:T(1,128)}', space=vmem, size = 0x9000, scoped, tag = 'internal scratch']
  %s0 = inlined_call_operand.hbm [shape: f32[8,128], index: 0, kind: input, shape index: {}]
  %s1 = inlined_call_operand.hbm [shape: f32[8,128], index: 1, kind: output, shape index: {}]
  %s2 = sld [smem:[#allocation0]]
  $region18: #{tpu_custom_call.1} parent=0
    _
  %s4 = ssub.s32 1, %s2
  %s5 = scalar_select 0, %s4, %s2
  $region1: #{tpu_custom_call.1} parent=0
    #allocation2 [shape = 'u8[4096]{0}', space=vmem, size = 0x1000, scoped, tag = 'input window, operand 0, single buffered']
    #allocation3 [shape = 's32[1]{0}', space=sflag, size = 0x4, scoped, tag = 'scoped memory for tpu_custom_call.1']
    #allocation4 [shape = 's32[1]{0}', space=sflag, size = 0x4, scoped, tag = 'scoped memory for tpu_custom_call.1']
    #allocation5 [shape = 'u8[4096]{0}', space=vmem, size = 0x1000, scoped, tag = 'output window, operand 0, single buffered']
    %6 = vsyncpa [#allocation3], 0
    %7 = vsyncpa [#allocation4], 0
    // Predicated region
    $region2: #{tpu_custom_call.1} parent=1 // pred_check
      _
    $region3: #{tpu_custom_call.1} parent=1 // pred_check_branch
      %9 = sbr.rel (0) target = $region5
    $region4: #{tpu_custom_call.1} parent=1 // pred_region
      %11 = vsyncadd [#allocation3], 0
      %s13 = sshll.u32 %s0, 4
      %s14 = int_to_ptr.hbm [resolvable:$true] %s13
      %s15 = sshll.u32 [#allocation2], 4
      %s16 = int_to_ptr.vmem [resolvable:$true] %s15
      %18 = dma.hbm_to_vmem [thread:$0]  %s14, 128, %s16, [#allocation3]
    $region5: #{tpu_custom_call.1} parent=1 // pred_fallthru
      _
    // Predicated region
    $region6: #{tpu_custom_call.1} parent=1 // pred_check
      _
    $region7: #{tpu_custom_call.1} parent=1 // pred_check_branch
      %20 = sbr.rel (0) target = $region9
    $region8: #{tpu_custom_call.1} parent=1 // pred_region
      %22 = dma.done [#allocation3], 128
    $region9: #{tpu_custom_call.1} parent=1 // pred_fallthru
      _
    %v23 = vld [vmem:[#allocation2] sm:$0xff]
    %24 = vrot.lane.b32.xlu0 %v23, 1
    %v25 = vpop.permute.xlu0 %24
    %26 = vst [vmem:[#allocation5] sm:$0xff] %v25
    // Predicated region
    $region10: #{tpu_custom_call.1} parent=1 // pred_check
      _
    $region11: #{tpu_custom_call.1} parent=1 // pred_check_branch
      %28 = sbr.rel (0) target = $region13
    $region12: #{tpu_custom_call.1} parent=1 // pred_region
      %30 = vsyncadd [#allocation4], 0
      %s32 = sshll.u32 [#allocation5], 4
      %s33 = int_to_ptr.vmem [resolvable:$true] %s32
      %s34 = sshll.u32 %s1, 4
      %s35 = int_to_ptr.hbm [resolvable:$true] %s34
      %37 = dma.vmem_to_hbm [thread:$0]  %s33, 128, %s35, [#allocation4]
    $region13: #{tpu_custom_call.1} parent=1 // pred_fallthru
      _
    // Predicated region
    $region14: #{tpu_custom_call.1} parent=1 // pred_check
      _
    $region15: #{tpu_custom_call.1} parent=1 // pred_check_branch
      %39 = sbr.rel (0) target = $region17
    $region16: #{tpu_custom_call.1} parent=1 // pred_region
      %41 = dma.done [#allocation4], 128
    $region17: #{tpu_custom_call.1} parent=1 // pred_fallthru
      _
    %42 = vsyncpa [#allocation3], 1
    %43 = vsyncpa [#allocation4], 1

</llo_original>
